<compile_context>
chip_gen: v7x
topology: tpu7x:2x2x1
jax: 0.10.0
libtpu: 0.0.40
codegen_flags: <defaults>
</compile_context>

<pallas_src>
import jax
import jax.numpy as jnp
from jax.experimental import pallas as pl
from jax.experimental.pallas import tpu as pltpu


def _round_up(x, m):
    return (x + m - 1) // m * m


def linear_dqn_kernel(x_ref, w1_ref, b1_ref, w2_ref, b2_ref, out_ref):
    # x_ref:   (TB, D_in)   batch tile (f32 or bf16)
    # w1_ref:  (D_in, H)    fc1 weight, transposed vs. PyTorch (VMEM-resident)
    # b1_ref:  (1, H)
    # w2_ref:  (H, A)       fc2 weight, transposed (VMEM-resident)
    # b2_ref:  (1, A)
    # out_ref: (TB, A)      f32, lane dim = full n_actions (no padding)
    h = jnp.dot(x_ref[...], w1_ref[...], preferred_element_type=jnp.float32)
    h = jnp.maximum(h + b1_ref[...].astype(jnp.float32), 0.0)       # f32 ReLU (VPU)
    # Keep hidden activations in f32; up-cast w2 instead of down-casting h.
    q = jnp.dot(h, w2_ref[...].astype(jnp.float32),
                preferred_element_type=jnp.float32)
    out_ref[...] = (q + b2_ref[...].astype(jnp.float32)).astype(out_ref.dtype)


def linear_dqn_forward(states, params, *, block_b=None):
    """Fused LinearDQN forward.

    states: [B, D_in] (f32 or bf16).
    params: (w1 [D_in, H], b1 [1, H], w2 [H, A], b2 [1, A]) already in kernel
            layout / dtype (prepare once outside the training loop).
    Returns Q-values [B, A] in f32.
    """
    w1, b1, w2, b2 = params
    B, d_in = states.shape
    hidden = w1.shape[1]
    n_actions = w2.shape[1]

    # bf16 batch tiles need 16-row alignment (min bf16 tile is (16, 128)).
    sublane = 16 if states.dtype == jnp.bfloat16 else 8
    x_bytes = states.dtype.itemsize
    w_bytes = (w1.size * w1.dtype.itemsize + w2.size * w2.dtype.itemsize
               + b1.size * b1.dtype.itemsize + b2.size * b2.dtype.itemsize)

    if block_b is None:
        # Per-step VMEM: double-buffered x tile + f32 out tile; resident
        # weights/biases are double-buffered once.  Budget kept under v5e's
        # 16 MiB scoped default.
        budget = 12 * 1024 * 1024
        per_row = 2 * (d_in * x_bytes + n_actions * 4)
        block_b = min(4096, max(sublane, (budget - 2 * w_bytes) // per_row))
        if B >= 4 * sublane:
            # >= 2 grid steps so the "parallel" batch axis spans both v7x TCs.
            block_b = min(block_b, pl.cdiv(B, 2))

    if block_b >= B:
        block_b = B                       # single full-dim block, grid=(1,)
    else:
        block_b = max(sublane, _round_up(block_b, sublane))

    grid = (pl.cdiv(B, block_b),)         # ragged last block handled by Pallas

    # Raise the scoped-VMEM limit only when the estimate needs it
    # (e.g. large flattened-image input_dims -> resident w1 dominates VMEM).
    est_vmem = 2 * w_bytes + 2 * block_b * (d_in * x_bytes + n_actions * 4)
    vmem_limit = None
    if est_vmem > 12 * 1024 * 1024:
        vmem_limit = int(min(100 * 2**20, est_vmem * 3 // 2))

    return pl.pallas_call(
        linear_dqn_kernel,
        out_shape=jax.ShapeDtypeStruct((B, n_actions), jnp.float32),
        grid_spec=pl.GridSpec(
            grid=grid,
            in_specs=[
                pl.BlockSpec((block_b, d_in), lambda i: (i, 0)),      # states tile
                pl.BlockSpec((d_in, hidden), lambda i: (0, 0)),       # w1 (resident)
                pl.BlockSpec((1, hidden), lambda i: (0, 0)),          # b1
                pl.BlockSpec((hidden, n_actions), lambda i: (0, 0)),  # w2 (resident)
                pl.BlockSpec((1, n_actions), lambda i: (0, 0)),       # b2
            ],
            # Lane dim equals the full array dim (n_actions): legal block shape,
            # no 128-lane padding and no post-kernel slice.
            out_specs=pl.BlockSpec((block_b, n_actions), lambda i: (i, 0)),
        ),
        compiler_params=pltpu.CompilerParams(
            dimension_semantics=("parallel",),     # batch tiles are independent
            vmem_limit_bytes=vmem_limit,
        ),
    )(states, w1, b1, w2, b2)


def init_params(key, input_dims, n_actions, hidden=128, dtype=jnp.float32):
    """PyTorch nn.Linear-style U(-1/sqrt(fan_in), 1/sqrt(fan_in)) init, already
    in kernel layout (weights transposed, biases [1, n]).  Call ONCE."""
    k1, k2, k3, k4 = jax.random.split(key, 4)
    bound1 = 1.0 / (input_dims ** 0.5)
    bound2 = 1.0 / (hidden ** 0.5)
    w1 = jax.random.uniform(k1, (input_dims, hidden), jnp.float32, -bound1, bound1)
    b1 = jax.random.uniform(k2, (1, hidden), jnp.float32, -bound1, bound1)
    w2 = jax.random.uniform(k3, (hidden, n_actions), jnp.float32, -bound2, bound2)
    b2 = jax.random.uniform(k4, (1, n_actions), jnp.float32, -bound2, bound2)
    return tuple(p.astype(dtype) for p in (w1, b1, w2, b2))


def _reference(states, params):
    # Pure-JAX reference of the module's forward semantics (HIGHEST precision).
    w1, b1, w2, b2 = [p.astype(jnp.float32) for p in params]
    hp = jax.lax.Precision.HIGHEST
    h = jnp.maximum(jnp.dot(states.astype(jnp.float32), w1, precision=hp) + b1, 0.0)
    return jnp.dot(h, w2, precision=hp) + b2


if __name__ == "__main__":
    # Shapes consistent with LinearDQN(lr, n_actions=4, input_dims=(32,)).
    batch = 10            # deliberately NOT a multiple of 8
    input_dims = 32
    n_actions = 4

    key = jax.random.PRNGKey(0)
    k_x, k_p, k_x2 = jax.random.split(key, 3)
    states = jax.random.normal(k_x, (batch, input_dims), dtype=jnp.float32)
    params = init_params(k_p, input_dims, n_actions)         # f32, kernel layout

    # ---- f32 path (exact semantics of the PyTorch module). ----
    ref = _reference(states, params)
    q = jax.block_until_ready(linear_dqn_forward(states, params))
    assert q.shape == (batch, n_actions)
    assert jnp.allclose(q, ref, atol=1e-4, rtol=1e-4)

    # ---- ragged multi-step grid (exercises partial-block masking + >=2 steps). ----
    states_big = jax.random.normal(k_x2, (50, input_dims), dtype=jnp.float32)
    ref_big = _reference(states_big, params)
    q_big = jax.block_until_ready(linear_dqn_forward(states_big, params))
    assert q_big.shape == (50, n_actions)
    assert jnp.allclose(q_big, ref_big, atol=1e-4, rtol=1e-4)

    # ---- optional bf16-storage path: params/states cast ONCE, outside forward. ----
    params_bf16 = tuple(p.astype(jnp.bfloat16) for p in params)
    q_bf16 = jax.block_until_ready(
        linear_dqn_forward(states.astype(jnp.bfloat16), params_bf16))
    assert q_bf16.shape == (batch, n_actions)
    assert jnp.allclose(q_bf16, ref, atol=5e-2, rtol=5e-2)

    # TODO(synk): Adam optimizer / MSELoss / device placement from the PyTorch
    # module are training utilities, not part of the forward pass.
    print("KERNEL_OK")
</pallas_src>

<mosaic_0001>
module attributes {stable_mosaic.version = 11 : i64} {
  func.func @linear_dqn_kernel(%arg0: i32, %arg1: memref<10x32xf32, #tpu.memory_space<vmem>>, %arg2: memref<32x128xf32, #tpu.memory_space<vmem>>, %arg3: memref<1x128xf32, #tpu.memory_space<vmem>>, %arg4: memref<128x4xf32, #tpu.memory_space<vmem>>, %arg5: memref<1x4xf32, #tpu.memory_space<vmem>>, %arg6: memref<10x4xf32, #tpu.memory_space<vmem>>) attributes {dimension_semantics = [#tpu.dimension_semantics<parallel>], iteration_bounds = array<i64: 1>, scalar_prefetch = 0 : i64, scratch_operands = 0 : i64, tpu.core_type = #tpu.core_type<tc>, window_params = [{transform_indices = @transform_0, window_bounds = array<i64: 10, 32>}, {pipeline_mode = #tpu.pipeline_mode<synchronous>, transform_indices = @transform_1, window_bounds = array<i64: 32, 128>}, {pipeline_mode = #tpu.pipeline_mode<synchronous>, transform_indices = @transform_2, window_bounds = array<i64: 1, 128>}, {pipeline_mode = #tpu.pipeline_mode<synchronous>, transform_indices = @transform_3, window_bounds = array<i64: 128, 4>}, {pipeline_mode = #tpu.pipeline_mode<synchronous>, transform_indices = @transform_4, window_bounds = array<i64: 1, 4>}, {transform_indices = @transform_5, window_bounds = array<i64: 10, 4>}]} {
    %c0 = arith.constant 0 : index
    %c0_0 = arith.constant 0 : index
    %0 = vector.load %arg1[%c0, %c0_0] : memref<10x32xf32, #tpu.memory_space<vmem>>, vector<10x32xf32>
    %c0_1 = arith.constant 0 : index
    %c0_2 = arith.constant 0 : index
    %1 = vector.load %arg2[%c0_1, %c0_2] : memref<32x128xf32, #tpu.memory_space<vmem>>, vector<32x128xf32>
    %cst = arith.constant dense<0.000000e+00> : vector<10x128xf32>
    %2 = tpu.matmul %0, %1, %cst {dimension_numbers = #tpu.dot_dimension_numbers<[1], [0], [0], [1], [0, 0, 1, 1], [], []>} : vector<10x32xf32>, vector<32x128xf32>, vector<10x128xf32> -> vector<10x128xf32>
    %c0_3 = arith.constant 0 : index
    %c0_4 = arith.constant 0 : index
    %3 = vector.load %arg3[%c0_3, %c0_4] : memref<1x128xf32, #tpu.memory_space<vmem>>, vector<1x128xf32>
    %4 = vector.broadcast %3 : vector<1x128xf32> to vector<10x128xf32>
    %5 = arith.addf %2, %4 : vector<10x128xf32>
    %cst_5 = arith.constant 0.000000e+00 : f32
    %6 = vector.broadcast %cst_5 : f32 to vector<10x128xf32>
    %7 = arith.maximumf %5, %6 : vector<10x128xf32>
    %c0_6 = arith.constant 0 : index
    %c0_7 = arith.constant 0 : index
    %8 = vector.load %arg4[%c0_6, %c0_7] : memref<128x4xf32, #tpu.memory_space<vmem>>, vector<128x4xf32>
    %cst_8 = arith.constant dense<0.000000e+00> : vector<10x4xf32>
    %9 = tpu.matmul %7, %8, %cst_8 {dimension_numbers = #tpu.dot_dimension_numbers<[1], [0], [0], [1], [0, 0, 1, 1], [], []>} : vector<10x128xf32>, vector<128x4xf32>, vector<10x4xf32> -> vector<10x4xf32>
    %c0_9 = arith.constant 0 : index
    %c0_10 = arith.constant 0 : index
    %10 = vector.load %arg5[%c0_9, %c0_10] : memref<1x4xf32, #tpu.memory_space<vmem>>, vector<1x4xf32>
    %11 = vector.broadcast %10 : vector<1x4xf32> to vector<10x4xf32>
    %12 = arith.addf %9, %11 : vector<10x4xf32>
    %c0_11 = arith.constant 0 : index
    %c0_12 = arith.constant 0 : index
    %13 = vector.load %arg6[%c0_11, %c0_12] : memref<10x4xf32, #tpu.memory_space<vmem>>, vector<10x4xf32>
    tpu.vector_store %arg6[%c0_11, %c0_12], %12 {strides = array<i32>} : memref<10x4xf32, #tpu.memory_space<vmem>>, vector<10x4xf32>,
    return
  }
  func.func @transform_0(%arg0: i32) -> (i32, i32) {
    %c0_i32 = arith.constant 0 : i32
    %c0_i32_0 = arith.constant 0 : i32
    return %arg0, %c0_i32 : i32, i32
  }
  func.func @transform_1(%arg0: i32) -> (i32, i32) {
    %c0_i32 = arith.constant 0 : i32
    %c0_i32_0 = arith.constant 0 : i32
    %c0_i32_1 = arith.constant 0 : i32
    return %c0_i32, %c0_i32_0 : i32, i32
  }
  func.func @transform_2(%arg0: i32) -> (i32, i32) {
    %c0_i32 = arith.constant 0 : i32
    %c0_i32_0 = arith.constant 0 : i32
    %c0_i32_1 = arith.constant 0 : i32
    return %c0_i32, %c0_i32_0 : i32, i32
  }
  func.func @transform_3(%arg0: i32) -> (i32, i32) {
    %c0_i32 = arith.constant 0 : i32
    %c0_i32_0 = arith.constant 0 : i32
    %c0_i32_1 = arith.constant 0 : i32
    return %c0_i32, %c0_i32_0 : i32, i32
  }
  func.func @transform_4(%arg0: i32) -> (i32, i32) {
    %c0_i32 = arith.constant 0 : i32
    %c0_i32_0 = arith.constant 0 : i32
    %c0_i32_1 = arith.constant 0 : i32
    return %c0_i32, %c0_i32_0 : i32, i32
  }
  func.func @transform_5(%arg0: i32) -> (i32, i32) {
    %c0_i32 = arith.constant 0 : i32
    %c0_i32_0 = arith.constant 0 : i32
    return %arg0, %c0_i32 : i32, i32
  }
}

</mosaic_0001>

<llo_original>
// kernel: tpu_custom_call.1
$region0: #{tpu_custom_call.1}
  #allocation0 [shape = 'u32[]', space=smem, size = 0x4, offset = 0x4, fixed_abs, tag = 'smem constant byte address 0x4 - core index']
  #allocation1 [shape = 'u32[144,128]{1,0:T(1,128)}', space=vmem, size = 0x12000, scoped, tag = 'internal scratch']
  %s0 = inlined_call_operand.vmem [shape: f32[10,32], index: 0, kind: input, shape index: {}]
  %s1 = inlined_call_operand.vmem [shape: f32[32,128], index: 1, kind: input, shape index: {}]
  %s2 = inlined_call_operand.vmem [shape: f32[1,128], index: 2, kind: input, shape index: {}]
  %s3 = inlined_call_operand.vmem [shape: f32[128,4], index: 3, kind: input, shape index: {}]
  %s4 = inlined_call_operand.vmem [shape: f32[1,4], index: 4, kind: input, shape index: {}]
  %s5 = inlined_call_operand.vmem [shape: f32[10,4], index: 5, kind: output, shape index: {}]
  %s6 = sld [smem:[#allocation0]]
  $region30: #{tpu_custom_call.1} parent=0
    _
  %s8 = ssub.s32 1, %s6
  %s9 = scalar_select 0, %s8, %s6
  // Predicated region
  $region2: #{tpu_custom_call.1} parent=0 // pred_check
    _
  $region3: #{tpu_custom_call.1} parent=0 // pred_check_branch
    %11 = sbr.rel (0) target = $region5
  $region4: #{tpu_custom_call.1} parent=0 // pred_region
    _
  $region5: #{tpu_custom_call.1} parent=0 // pred_fallthru
    _
  // Predicated region
  $region6: #{tpu_custom_call.1} parent=0 // pred_check
    _
  $region7: #{tpu_custom_call.1} parent=0 // pred_check_branch
    %13 = sbr.rel (0) target = $region9
  $region8: #{tpu_custom_call.1} parent=0 // pred_region
    _
  $region9: #{tpu_custom_call.1} parent=0 // pred_fallthru
    _
  // Predicated region
  $region10: #{tpu_custom_call.1} parent=0 // pred_check
    _
  $region11: #{tpu_custom_call.1} parent=0 // pred_check_branch
    %15 = sbr.rel (0) target = $region13
  $region12: #{tpu_custom_call.1} parent=0 // pred_region
    _
  $region13: #{tpu_custom_call.1} parent=0 // pred_fallthru
    _
  // Predicated region
  $region14: #{tpu_custom_call.1} parent=0 // pred_check
    _
  $region15: #{tpu_custom_call.1} parent=0 // pred_check_branch
    %17 = sbr.rel (0) target = $region17
  $region16: #{tpu_custom_call.1} parent=0 // pred_region
    _
  $region17: #{tpu_custom_call.1} parent=0 // pred_fallthru
    _
  // Predicated region
  $region18: #{tpu_custom_call.1} parent=0 // pred_check
    _
  $region19: #{tpu_custom_call.1} parent=0 // pred_check_branch
    %19 = sbr.rel (0) target = $region21
  $region20: #{tpu_custom_call.1} parent=0 // pred_region
    _
  $region21: #{tpu_custom_call.1} parent=0 // pred_fallthru
    _
  %v20 = vld [vmem:[%s0] sm:$0xff]
  %v21 = vld [vmem:[%s0 + $0x8] sm:$0x3]
  %v22 = vld [vmem:[%s1] sm:$0xff]
  %v23 = vld [vmem:[%s1 + $0x8] sm:$0xff]
  %v24 = vld [vmem:[%s1 + $0x10] sm:$0xff]
  %v25 = vld [vmem:[%s1 + $0x18] sm:$0xff]
  %v26 = vld [vmem:[%s2] sm:$0x1]
  %v28 = vlaneseq
  %v29 = vshrl.u32 %v28, 7
  %v30 = vsub.s32 0, %v29
  %v31 = vrot.slane %v26, %v30
  %vm33 = vcmask 261120
  %v35 = vsel %vm33, %v20, 0
  %v38 = vsel %vm33, %v21, 0
  %40 = vmatprep.subr.mxu0 0.0
  %41 = vmatpush1.msra.mxu0 %v22
  %42 = vmatprep.subr.mxu0 0.0
  %43 = vmatpush1.msra.mxu0 %v23
  %44 = vmatprep.subr.mxu0 0.0
  %45 = vmatpush1.msra.mxu0 %v24
  %46 = vmatprep.subr.mxu0 0.0
  %47 = vmatpush1.msra.mxu0 %v25
  %48 = vmatprep.subr.mxu0 0.0
  %49 = vmatpush1.msra.mxu0 0.0
  %50 = vmatprep.subr.mxu0 0.0
  %51 = vmatpush1.msra.mxu0 0.0
  %52 = vmatprep.subr.mxu0 0.0
  %53 = vmatpush1.msra.mxu0 0.0
  %54 = vmatprep.subr.mxu0 0.0
  %55 = vmatpush1.msra.mxu0 0.0
  %56 = vmatprep.subr.mxu0 0.0
  %57 = vmatpush1.msra.mxu0 0.0
  %58 = vmatprep.subr.mxu0 0.0
  %59 = vmatpush1.msra.mxu0 0.0
  %60 = vmatprep.subr.mxu0 0.0
  %61 = vmatpush1.msra.mxu0 0.0
  %62 = vmatprep.subr.mxu0 0.0
  %63 = vmatpush1.msra.mxu0 0.0
  %64 = vmatprep.subr.mxu0 0.0
  %65 = vmatpush1.msra.mxu0 0.0
  %66 = vmatprep.subr.mxu0 0.0
  %67 = vmatpush1.msra.mxu0 0.0
  %68 = vmatprep.subr.mxu0 0.0
  %69 = vmatpush1.msra.mxu0 0.0
  %70 = vmatprep.subr.mxu0 0.0
  %71 = vmatpush1.msra.mxu0 0.0
  %72 = vmatprep.subr.mxu0 0.0
  %73 = vmatpush1.msra.mxu0 0.0
  %74 = vmatprep.subr.mxu0 0.0
  %75 = vmatpush1.msra.mxu0 0.0
  %76 = vmatprep.subr.mxu0 0.0
  %77 = vmatpush1.msra.mxu0 0.0
  %78 = vmatprep.subr.mxu0 0.0
  %79 = vmatpush1.msra.mxu0 0.0
  %80 = vmatprep.subr.mxu0 0.0
  %81 = vmatpush1.msra.mxu0 0.0
  %82 = vmatprep.subr.mxu0 0.0
  %83 = vmatpush1.msra.mxu0 0.0
  %84 = vmatprep.subr.mxu0 0.0
  %85 = vmatpush1.msra.mxu0 0.0
  %86 = vmatprep.subr.mxu0 0.0
  %87 = vmatpush1.msra.mxu0 0.0
  %88 = vmatprep.subr.mxu0 0.0
  %89 = vmatpush1.msra.mxu0 0.0
  %90 = vmatprep.subr.mxu0 0.0
  %91 = vmatpush1.msra.mxu0 0.0
  %92 = vmatprep.subr.mxu0 0.0
  %93 = vmatpush1.msra.mxu0 0.0
  %94 = vmatprep.subr.mxu0 0.0
  %95 = vmatpush1.msra.mxu0 0.0
  %96 = vmatprep.subr.mxu0 0.0
  %97 = vmatpush1.msra.mxu0 0.0
  %98 = vmatprep.subr.mxu0 0.0
  %99 = vmatpush1.msra.mxu0 0.0
  %100 = vmatprep.subr.mxu0 0.0
  %101 = vmatpush1.msra.mxu0 0.0
  %102 = vmatprep.subr.mxu0 0.0
  %103 = vmatpush1.msra.mxu0 0.0
  %104 = vmatprep.mubr.f32.mxu0 0.0
  %105 = vmatmul.mubr.f32.gmra.mrb[0].mxu0 %v35
  %v106 = vpop.f32.mrb[0].mxu0
  %v107 = vadd.f32 %v31, %v106
  %v108 = vpop.f32.mrb[0].mxu0
  %109 = vmatprep.mubr.f32.mxu0 0.0
  %110 = vmatmul.mubr.f32.gmra.mrb[0].mxu0 %v38
  %v111 = vpop.f32.mrb[0].mxu0
  %v112 = vadd.f32 %v31, %v111
  %v113 = vpop.f32.mrb[0].mxu0
  %114 = vdwg.mxu0
  %v115 = vmax.f32 %v107, 0.0
  %v116 = vmax.f32 %v112, 0.0
  %v117 = vld [vmem:[%s3] sm:$0xff]
  %v118 = vld [vmem:[%s3 + $0x8] sm:$0xff]
  %v119 = vld [vmem:[%s3 + $0x10] sm:$0xff]
  %v120 = vld [vmem:[%s3 + $0x18] sm:$0xff]
  %v121 = vld [vmem:[%s3 + $0x20] sm:$0xff]
  %v122 = vld [vmem:[%s3 + $0x28] sm:$0xff]
  %v123 = vld [vmem:[%s3 + $0x30] sm:$0xff]
  %v124 = vld [vmem:[%s3 + $0x38] sm:$0xff]
  %v125 = vld [vmem:[%s3 + $0x40] sm:$0xff]
  %v126 = vld [vmem:[%s3 + $0x48] sm:$0xff]
  %v127 = vld [vmem:[%s3 + $0x50] sm:$0xff]
  %v128 = vld [vmem:[%s3 + $0x58] sm:$0xff]
  %v129 = vld [vmem:[%s3 + $0x60] sm:$0xff]
  %v130 = vld [vmem:[%s3 + $0x68] sm:$0xff]
  %v131 = vld [vmem:[%s3 + $0x70] sm:$0xff]
  %v132 = vld [vmem:[%s3 + $0x78] sm:$0xff]
  %v133 = vld [vmem:[%s4] sm:$0x1]
  %v135 = vlaneseq
  %v136 = vshrl.u32 %v135, 7
  %v137 = vsub.s32 0, %v136
  %v138 = vrot.slane %v133, %v137
  %140 = vmatprep.subr.mxu0 0.0
  %141 = vmatpush1.msra.mxu0 %v117
  %142 = vmatprep.subr.mxu0 0.0
  %143 = vmatpush1.msra.mxu0 %v118
  %144 = vmatprep.subr.mxu0 0.0
  %145 = vmatpush1.msra.mxu0 %v119
  %146 = vmatprep.subr.mxu0 0.0
  %147 = vmatpush1.msra.mxu0 %v120
  %148 = vmatprep.subr.mxu0 0.0
  %149 = vmatpush1.msra.mxu0 %v121
  %150 = vmatprep.subr.mxu0 0.0
  %151 = vmatpush1.msra.mxu0 %v122
  %152 = vmatprep.subr.mxu0 0.0
  %153 = vmatpush1.msra.mxu0 %v123
  %154 = vmatprep.subr.mxu0 0.0
  %155 = vmatpush1.msra.mxu0 %v124
  %156 = vmatprep.subr.mxu0 0.0
  %157 = vmatpush1.msra.mxu0 %v125
  %158 = vmatprep.subr.mxu0 0.0
  %159 = vmatpush1.msra.mxu0 %v126
  %160 = vmatprep.subr.mxu0 0.0
  %161 = vmatpush1.msra.mxu0 %v127
  %162 = vmatprep.subr.mxu0 0.0
  %163 = vmatpush1.msra.mxu0 %v128
  %164 = vmatprep.subr.mxu0 0.0
  %165 = vmatpush1.msra.mxu0 %v129
  %166 = vmatprep.subr.mxu0 0.0
  %167 = vmatpush1.msra.mxu0 %v130
  %168 = vmatprep.subr.mxu0 0.0
  %169 = vmatpush1.msra.mxu0 %v131
  %170 = vmatprep.subr.mxu0 0.0
  %171 = vmatpush1.msra.mxu0 %v132
  %172 = vmatprep.subr.mxu0 0.0
  %173 = vmatpush1.msra.mxu0 0.0
  %174 = vmatprep.subr.mxu0 0.0
  %175 = vmatpush1.msra.mxu0 0.0
  %176 = vmatprep.subr.mxu0 0.0
  %177 = vmatpush1.msra.mxu0 0.0
  %178 = vmatprep.subr.mxu0 0.0
  %179 = vmatpush1.msra.mxu0 0.0
  %180 = vmatprep.subr.mxu0 0.0
  %181 = vmatpush1.msra.mxu0 0.0
  %182 = vmatprep.subr.mxu0 0.0
  %183 = vmatpush1.msra.mxu0 0.0
  %184 = vmatprep.subr.mxu0 0.0
  %185 = vmatpush1.msra.mxu0 0.0
  %186 = vmatprep.subr.mxu0 0.0
  %187 = vmatpush1.msra.mxu0 0.0
  %188 = vmatprep.subr.mxu0 0.0
  %189 = vmatpush1.msra.mxu0 0.0
  %190 = vmatprep.subr.mxu0 0.0
  %191 = vmatpush1.msra.mxu0 0.0
  %192 = vmatprep.subr.mxu0 0.0
  %193 = vmatpush1.msra.mxu0 0.0
  %194 = vmatprep.subr.mxu0 0.0
  %195 = vmatpush1.msra.mxu0 0.0
  %196 = vmatprep.subr.mxu0 0.0
  %197 = vmatpush1.msra.mxu0 0.0
  %198 = vmatprep.subr.mxu0 0.0
  %199 = vmatpush1.msra.mxu0 0.0
  %200 = vmatprep.subr.mxu0 0.0
  %201 = vmatpush1.msra.mxu0 0.0
  %202 = vmatprep.subr.mxu0 0.0
  %203 = vmatpush1.msra.mxu0 0.0
  %204 = vmatprep.mubr.f32.mxu0 0.0
  %205 = vmatmul.mubr.f32.gmra.mrb[0].mxu0 %v115
  %v206 = vpop.f32.mrb[0].mxu0
  %v207 = vadd.f32 %v138, %v206
  %v208 = vpop.f32.mrb[0].mxu0
  %209 = vmatprep.mubr.f32.mxu0 0.0
  %210 = vmatmul.mubr.f32.gmra.mrb[0].mxu0 %v116
  %v211 = vpop.f32.mrb[0].mxu0
  %v212 = vadd.f32 %v138, %v211
  %v213 = vpop.f32.mrb[0].mxu0
  %214 = vdwg.mxu0
  %vm215 = vcmask 31744
  %216 = vst.msk [vmem:[%s5] sm:$0xff] %vm215, %v207
  %vm217 = vcmask 25600
  %218 = vst.msk [vmem:[%s5 + $0x8] sm:$0x3] %vm217, %v212
  // Predicated region
  $region22: #{tpu_custom_call.1} parent=0 // pred_check
    _
  $region23: #{tpu_custom_call.1} parent=0 // pred_check_branch
    %220 = sbr.rel (0) target = $region25
  $region24: #{tpu_custom_call.1} parent=0 // pred_region
    _
  $region25: #{tpu_custom_call.1} parent=0 // pred_fallthru
    _
  // Predicated region
  $region26: #{tpu_custom_call.1} parent=0 // pred_check
    _
  $region27: #{tpu_custom_call.1} parent=0 // pred_check_branch
    %222 = sbr.rel (0) target = $region29
  $region28: #{tpu_custom_call.1} parent=0 // pred_region
    _
  $region29: #{tpu_custom_call.1} parent=0 // pred_fallthru
    _

</llo_original>
